<compile_context>
chip_gen: v6e
topology: v6e:2x2x1
jax: 0.10.0
libtpu: 0.0.40
codegen_flags: <defaults>
</compile_context>

<pallas_src>
import functools
import math

import jax
import jax.numpy as jnp
from jax import lax
from jax.experimental import pallas as pl
from jax.experimental.pallas import tpu as pltpu


def _round_up(n, m):
    return ((n + m - 1) // m) * m


def _pick_blocks(q_len, k_len, head_dim, itemsize, masked_full_q):
    """VMEM-aware (block_q, block_k, padded_q, padded_k) selection.

    Tiles are per-(batch, head): q/o are (bq, D), k/v are (bk, D).  The budget
    keeps the double-buffered working set under ~40 MiB so the kernel fits the
    64 MiB v7x VMEM with headroom while still using large tiles on v5e/v6e.
    """
    budget = 40 * 1024 * 1024

    def footprint(bq, bk):
        io = 2 * (2 * bq * head_dim + 2 * bk * head_dim) * itemsize  # q,o,k,v x2 buffers
        io += 2 * (bq if masked_full_q else 8) * bk                  # int8 mask tile
        scratch = bq * head_dim * 2 + bq * head_dim * 4              # qs (bf16) + acc (f32)
        scratch += 2 * bq * 128 * 4                                  # m/l (lane-padded f32)
        return io + scratch

    bq_max, bk_max = 512, 1024
    while (footprint(min(bq_max, _round_up(q_len, 8)),
                     min(bk_max, _round_up(k_len, 8))) > budget and bk_max > 128):
        bk_max //= 2
    while (footprint(min(bq_max, _round_up(q_len, 8)),
                     min(bk_max, _round_up(k_len, 8))) > budget and bq_max > 8):
        bq_max //= 2

    # Balanced blocks: keep the block count implied by the caps but shrink the
    # block to minimize tail padding (handles non-divisible sequence lengths).
    nq = -(-q_len // bq_max)
    bq = _round_up(-(-q_len // nq), 8)          # sublane dim: multiple of 8
    qp = nq * bq
    nk = -(-k_len // bk_max)
    if nk == 1:
        bk = _round_up(k_len, 8)                # full-extent block is always legal
    else:
        bk = _round_up(-(-k_len // nk), 128)    # mask's lane dim: multiple of 128
    kp = nk * bk
    return bq, bk, qp, kp


def _make_kernel(scale, compute_dtype, masked):
    def kernel(*refs):
        if masked:
            mask_ref, q_ref, k_ref, v_ref, o_ref, qs_ref, acc_ref, m_ref, l_ref = refs
        else:
            q_ref, k_ref, v_ref, o_ref, qs_ref, acc_ref, m_ref, l_ref = refs

        kv_idx = pl.program_id(3)

        @pl.when(kv_idx == 0)
        def _init():
            # q tile is resident across the whole kv axis: scale + cast it ONCE.
            qs_ref[...] = (q_ref[0, 0] * scale).astype(qs_ref.dtype)
            m_ref[...] = jnp.full(m_ref.shape, -jnp.inf, dtype=jnp.float32)
            l_ref[...] = jnp.zeros(l_ref.shape, dtype=jnp.float32)
            acc_ref[...] = jnp.zeros(acc_ref.shape, dtype=jnp.float32)

        k = k_ref[0, 0].astype(compute_dtype)       # (bk, D) MXU operand
        v = v_ref[0, 0].astype(compute_dtype)       # (bk, D) MXU operand

        # scores: contract D directly (no transpose of K); f32 accumulation.
        s = lax.dot_general(qs_ref[...], k, (((1,), (1,)), ((), ())),
                            preferred_element_type=jnp.float32)       # (bq, bk)
        if masked:
            keep = mask_ref[0, 0] != 0                                  # (1|bq, bk)
            s = jnp.where(keep, s, -1e20)   # Python literal -> no captured consts

        m_prev = m_ref[...]                                             # (bq, 1)
        m_new = jnp.maximum(m_prev, jnp.max(s, axis=-1, keepdims=True))
        alpha = jnp.exp(m_prev - m_new)
        # exp in the compute dtype (bf16 EUP path on v6e/v7x); sums stay f32.
        p = jnp.exp((s - m_new).astype(compute_dtype))                  # (bq, bk)
        l_ref[...] = alpha * l_ref[...] + jnp.sum(p, axis=-1, keepdims=True,
                                                  dtype=jnp.float32)
        m_ref[...] = m_new
        pv = lax.dot_general(p, v, (((1,), (0,)), ((), ())),
                             preferred_element_type=jnp.float32)        # (bq, D)
        acc_ref[...] = alpha * acc_ref[...] + pv

        @pl.when(kv_idx == pl.num_programs(3) - 1)
        def _finalize():
            # Exact reciprocal: runs once per q-tile, negligible cost, closer
            # parity with the torch reference than the approx EUP path.
            inv = pl.reciprocal(l_ref[...], approx=False)
            o_ref[0, 0] = (acc_ref[...] * inv).astype(o_ref.dtype)

    return kernel


@functools.partial(jax.jit, static_argnames=("dropout",))
def scaled_dot_product_attention(queries, keys, values, mask=None, dropout=0.0):
    """queries/keys/values: [B, S, H, D] (torch 'bqhd'/'bkhd' layout).

    Returns attention output in the same [B, Q, H, D] layout as the PyTorch
    module.  `dropout` follows eval-mode semantics (identity).
    """
    del dropout  # eval-mode: nn.Dropout == identity
    B, Q, H, D = queries.shape
    K = keys.shape[1]

    in_dtype = queries.dtype
    compute_dtype = jnp.bfloat16 if in_dtype == jnp.float32 else in_dtype
    scale = 1.0 / math.sqrt(D)

    masked_full_q = mask is not None and mask.ndim >= 2 and mask.shape[-2] == Q
    bq, bk, Qp, Kp = _pick_blocks(Q, K, D, jnp.dtype(in_dtype).itemsize,
                                  masked_full_q)

    # bqhd -> bhqd: one XLA transpose pass each way.  Inside the kernel every
    # block is then a (tile, D) slab with D as the full-extent lane dim.
    qt = jnp.transpose(queries, (0, 2, 1, 3))
    kt = jnp.transpose(keys, (0, 2, 1, 3))
    vt = jnp.transpose(values, (0, 2, 1, 3))
    if Qp != Q:
        qt = jnp.pad(qt, ((0, 0), (0, 0), (0, Qp - Q), (0, 0)))
    if Kp != K:
        kt = jnp.pad(kt, ((0, 0), (0, 0), (0, Kp - K), (0, 0)))
        vt = jnp.pad(vt, ((0, 0), (0, 0), (0, Kp - K), (0, 0)))

    # Normalize the mask to an int8 "keep" array; broadcast dims stay size 1
    # (never blown up over batch/head/query in HBM).  Key-tail padding
    # (Kp > K) is folded in as keep=0.
    keep = None
    if mask is not None:
        m = mask
        if m.ndim > 4:
            raise NotImplementedError("mask rank > 4 is not supported")
        while m.ndim < 4:
            m = m[None]
        Bm, Hm, Qm, Km = m.shape
        if Bm not in (1, B) or Hm not in (1, H) or Qm not in (1, Q) or Km not in (1, K):
            raise ValueError(f"mask shape {mask.shape} does not broadcast to "
                             f"{(B, H, Q, K)}")
        keep_b = (m != 0)
        if Km != K:
            keep_b = jnp.broadcast_to(keep_b, (Bm, Hm, Qm, K))
        pad_q = (Qp - Q) if Qm == Q else 0
        keep = jnp.pad(keep_b, ((0, 0), (0, 0), (0, pad_q), (0, Kp - K)),
                       constant_values=False).astype(jnp.int8)
    elif Kp != K:
        keep = (jnp.arange(Kp) < K)[None, None, None, :].astype(jnp.int8)

    grid = (B, H, Qp // bq, Kp // bk)
    q_spec = pl.BlockSpec((1, 1, bq, D), lambda b, h, qi, ki: (b, h, qi, 0))
    k_spec = pl.BlockSpec((1, 1, bk, D), lambda b, h, qi, ki: (b, h, ki, 0))
    v_spec = pl.BlockSpec((1, 1, bk, D), lambda b, h, qi, ki: (b, h, ki, 0))
    o_spec = pl.BlockSpec((1, 1, bq, D), lambda b, h, qi, ki: (b, h, qi, 0))
    out_shape = jax.ShapeDtypeStruct((B, H, Qp, D), in_dtype)
    scratch = [
        pltpu.VMEM((bq, D), compute_dtype),   # pre-scaled, pre-cast q tile
        pltpu.VMEM((bq, D), jnp.float32),     # f32 accumulator
        pltpu.VMEM((bq, 1), jnp.float32),     # running max m
        pltpu.VMEM((bq, 1), jnp.float32),     # running sum l
    ]
    cparams = pltpu.CompilerParams(
        dimension_semantics=("parallel", "parallel", "parallel", "arbitrary"),
        vmem_limit_bytes=48 * 1024 * 1024,    # tiles budgeted to ~40 MiB (v7x-safe)
    )

    if keep is None:
        out = pl.pallas_call(
            _make_kernel(scale, compute_dtype, masked=False),
            grid=grid,
            in_specs=[q_spec, k_spec, v_spec],
            out_specs=o_spec,
            out_shape=out_shape,
            scratch_shapes=scratch,
            compiler_params=cparams,
        )(qt, kt, vt)
    else:
        Bk, Hk, Qk, _ = keep.shape
        has_b, has_h, has_q = Bk == B, Hk == H, Qk == Qp
        mask_spec = pl.BlockSpec(
            (1, 1, bq if has_q else 1, bk),
            lambda b, h, qi, ki: (b if has_b else 0, h if has_h else 0,
                                  qi if has_q else 0, ki))
        out = pl.pallas_call(
            _make_kernel(scale, compute_dtype, masked=True),
            grid=grid,
            in_specs=[mask_spec, q_spec, k_spec, v_spec],
            out_specs=o_spec,
            out_shape=out_shape,
            scratch_shapes=scratch,
            compiler_params=cparams,
        )(keep, qt, kt, vt)

    if Qp != Q:
        out = out[:, :, :Q, :]
    # bhqd -> bqhd (torch output layout).
    return jnp.transpose(out, (0, 2, 1, 3))


def _reference(queries, keys, values, mask=None):
    qf, kf, vf = (x.astype(jnp.float32) for x in (queries, keys, values))
    dk = keys.shape[-1]
    logits = jnp.einsum("bqhd,bkhd->bhqk", qf, kf) / (dk ** 0.5)
    if mask is not None:
        logits = jnp.where(mask == 0, -1e20, logits)
    w = jax.nn.softmax(logits, axis=-1)
    return jnp.einsum("bhqv,bvhd->bqhd", w, vf).astype(queries.dtype)


if __name__ == "__main__":
    # Small shapes: batch=2, seq=8, heads=4, head_dim=32
    B, S, H, D = 2, 8, 4, 32
    key = jax.random.PRNGKey(0)
    kq, kk, kv, km = jax.random.split(key, 4)
    queries = jax.random.normal(kq, (B, S, H, D), dtype=jnp.float32)
    keys = jax.random.normal(kk, (B, S, H, D), dtype=jnp.float32)
    values = jax.random.normal(kv, (B, S, H, D), dtype=jnp.float32)

    # f32 inputs are computed with bf16 MXU operands and bf16 exp (standard
    # flash-attention precision trade-off), so compare with a ~3e-2 tolerance;
    # real algorithmic errors are O(0.3-1) and still clearly separated.
    TOL = dict(atol=3e-2, rtol=3e-2)

    # no-mask path (matches mask=None in the torch module)
    out = scaled_dot_product_attention(queries, keys, values, mask=None, dropout=0.1)
    out = jax.block_until_ready(out)
    ref = _reference(queries, keys, values, mask=None)
    assert out.shape == (B, S, H, D)
    assert jnp.allclose(out, ref, **TOL), float(jnp.max(jnp.abs(out - ref)))

    # masked path (broadcastable key-padding mask of shape (B,1,1,S))
    mask = (jax.random.uniform(km, (B, 1, 1, S)) > 0.3).astype(jnp.int32)
    out_m = scaled_dot_product_attention(queries, keys, values, mask=mask, dropout=0.1)
    out_m = jax.block_until_ready(out_m)
    ref_m = _reference(queries, keys, values, mask=mask)
    assert jnp.allclose(out_m, ref_m, **TOL), float(jnp.max(jnp.abs(out_m - ref_m)))

    print("KERNEL_OK")
</pallas_src>

<mosaic_0001>
module attributes {stable_mosaic.version = 11 : i64} {
  func.func @kernel(%arg0: i32, %arg1: i32, %arg2: i32, %arg3: i32, %arg4: memref<1x1x8x32xf32, #tpu.memory_space<vmem>>, %arg5: memref<1x1x8x32xf32, #tpu.memory_space<vmem>>, %arg6: memref<1x1x8x32xf32, #tpu.memory_space<vmem>>, %arg7: memref<1x1x8x32xf32, #tpu.memory_space<vmem>>, %arg8: memref<8x32xbf16, #tpu.memory_space<vmem>>, %arg9: memref<8x32xf32, #tpu.memory_space<vmem>>, %arg10: memref<8x1xf32, #tpu.memory_space<vmem>>, %arg11: memref<8x1xf32, #tpu.memory_space<vmem>>) attributes {dimension_semantics = [#tpu.dimension_semantics<parallel>, #tpu.dimension_semantics<parallel>, #tpu.dimension_semantics<parallel>, #tpu.dimension_semantics<arbitrary>], iteration_bounds = array<i64: 2, 4, 1, 1>, scalar_prefetch = 0 : i64, scratch_operands = 4 : i64, tpu.core_type = #tpu.core_type<tc>, window_params = [{transform_indices = @transform_0, window_bounds = array<i64: 1, 1, 8, 32>}, {transform_indices = @transform_1, window_bounds = array<i64: 1, 1, 8, 32>}, {transform_indices = @transform_2, window_bounds = array<i64: 1, 1, 8, 32>}, {transform_indices = @transform_3, window_bounds = array<i64: 1, 1, 8, 32>}]} {
    %c0_i32 = arith.constant 0 : i32
    %0 = arith.cmpi eq, %arg3, %c0_i32 : i32
    %1 = arith.extui %0 : i1 to i32
    %c0_i32_0 = arith.constant 0 : i32
    %2 = arith.cmpi ne, %1, %c0_i32_0 : i32
    scf.if %2 {
      %c0_27 = arith.constant 0 : index
      %c0_28 = arith.constant 0 : index
      %c0_29 = arith.constant 0 : index
      %c0_30 = arith.constant 0 : index
      %38 = vector.load %arg4[%c0_27, %c0_28, %c0_29, %c0_30] : memref<1x1x8x32xf32, #tpu.memory_space<vmem>>, vector<1x1x8x32xf32>
      %39 = vector.shape_cast %38 : vector<1x1x8x32xf32> to vector<8x32xf32>
      %cst_31 = arith.constant 0.176776692 : f32
      %40 = vector.broadcast %cst_31 : f32 to vector<8x32xf32>
      %41 = arith.mulf %39, %40 : vector<8x32xf32>
      %42 = arith.truncf %41 : vector<8x32xf32> to vector<8x32xbf16>
      %c0_32 = arith.constant 0 : index
      %c0_33 = arith.constant 0 : index
      %43 = vector.load %arg8[%c0_32, %c0_33] : memref<8x32xbf16, #tpu.memory_space<vmem>>, vector<8x32xbf16>
      tpu.vector_store %arg8[%c0_32, %c0_33], %42 {strides = array<i32>} : memref<8x32xbf16, #tpu.memory_space<vmem>>, vector<8x32xbf16>,
      %cst_34 = arith.constant 0xFF800000 : f32
      %44 = vector.broadcast %cst_34 : f32 to vector<8x1xf32>
      %c0_35 = arith.constant 0 : index
      %c0_36 = arith.constant 0 : index
      %45 = vector.load %arg10[%c0_35, %c0_36] : memref<8x1xf32, #tpu.memory_space<vmem>>, vector<8x1xf32>
      tpu.vector_store %arg10[%c0_35, %c0_36], %44 {strides = array<i32>} : memref<8x1xf32, #tpu.memory_space<vmem>>, vector<8x1xf32>,
      %cst_37 = arith.constant 0.000000e+00 : f32
      %46 = vector.broadcast %cst_37 : f32 to vector<8x1xf32>
      %c0_38 = arith.constant 0 : index
      %c0_39 = arith.constant 0 : index
      %47 = vector.load %arg11[%c0_38, %c0_39] : memref<8x1xf32, #tpu.memory_space<vmem>>, vector<8x1xf32>
      tpu.vector_store %arg11[%c0_38, %c0_39], %46 {strides = array<i32>} : memref<8x1xf32, #tpu.memory_space<vmem>>, vector<8x1xf32>,
      %cst_40 = arith.constant 0.000000e+00 : f32
      %48 = vector.broadcast %cst_40 : f32 to vector<8x32xf32>
      %c0_41 = arith.constant 0 : index
      %c0_42 = arith.constant 0 : index
      %49 = vector.load %arg9[%c0_41, %c0_42] : memref<8x32xf32, #tpu.memory_space<vmem>>, vector<8x32xf32>
      tpu.vector_store %arg9[%c0_41, %c0_42], %48 {strides = array<i32>} : memref<8x32xf32, #tpu.memory_space<vmem>>, vector<8x32xf32>,
    } else {
    }
    %c0 = arith.constant 0 : index
    %c0_1 = arith.constant 0 : index
    %c0_2 = arith.constant 0 : index
    %c0_3 = arith.constant 0 : index
    %3 = vector.load %arg5[%c0, %c0_1, %c0_2, %c0_3] : memref<1x1x8x32xf32, #tpu.memory_space<vmem>>, vector<1x1x8x32xf32>
    %4 = vector.shape_cast %3 : vector<1x1x8x32xf32> to vector<8x32xf32>
    %5 = arith.truncf %4 : vector<8x32xf32> to vector<8x32xbf16>
    %c0_4 = arith.constant 0 : index
    %c0_5 = arith.constant 0 : index
    %c0_6 = arith.constant 0 : index
    %c0_7 = arith.constant 0 : index
    %6 = vector.load %arg6[%c0_4, %c0_5, %c0_6, %c0_7] : memref<1x1x8x32xf32, #tpu.memory_space<vmem>>, vector<1x1x8x32xf32>
    %7 = vector.shape_cast %6 : vector<1x1x8x32xf32> to vector<8x32xf32>
    %8 = arith.truncf %7 : vector<8x32xf32> to vector<8x32xbf16>
    %c0_8 = arith.constant 0 : index
    %c0_9 = arith.constant 0 : index
    %9 = vector.load %arg8[%c0_8, %c0_9] : memref<8x32xbf16, #tpu.memory_space<vmem>>, vector<8x32xbf16>
    %cst = arith.constant dense<0.000000e+00> : vector<8x8xf32>
    %10 = tpu.matmul %9, %5, %cst {dimension_numbers = #tpu.dot_dimension_numbers<[1], [1], [0], [0], [0, 0, 1, 0], [], []>} : vector<8x32xbf16>, vector<8x32xbf16>, vector<8x8xf32> -> vector<8x8xf32>
    %c0_10 = arith.constant 0 : index
    %c0_11 = arith.constant 0 : index
    %11 = vector.load %arg10[%c0_10, %c0_11] : memref<8x1xf32, #tpu.memory_space<vmem>>, vector<8x1xf32>
    %cst_12 = arith.constant dense<0xFF800000> : vector<8xf32>
    %12 = vector.multi_reduction <maximumf>, %10, %cst_12 [1] : vector<8x8xf32> to vector<8xf32>
    %13 = vector.shape_cast %12 : vector<8xf32> to vector<8x1xf32>
    %14 = arith.maximumf %11, %13 : vector<8x1xf32>
    %15 = arith.subf %11, %14 : vector<8x1xf32>
    %16 = math.exp %15 : vector<8x1xf32>
    %17 = vector.broadcast %14 : vector<8x1xf32> to vector<8x8xf32>
    %18 = arith.subf %10, %17 : vector<8x8xf32>
    %19 = arith.truncf %18 : vector<8x8xf32> to vector<8x8xbf16>
    %20 = math.exp %19 : vector<8x8xbf16>
    %c0_13 = arith.constant 0 : index
    %c0_14 = arith.constant 0 : index
    %21 = vector.load %arg11[%c0_13, %c0_14] : memref<8x1xf32, #tpu.memory_space<vmem>>, vector<8x1xf32>
    %22 = arith.mulf %16, %21 : vector<8x1xf32>
    %23 = arith.extf %20 : vector<8x8xbf16> to vector<8x8xf32>
    %cst_15 = arith.constant dense<0.000000e+00> : vector<8xf32>
    %24 = vector.multi_reduction <add>, %23, %cst_15 [1] : vector<8x8xf32> to vector<8xf32>
    %25 = vector.shape_cast %24 : vector<8xf32> to vector<8x1xf32>
    %26 = arith.addf %22, %25 : vector<8x1xf32>
    %c0_16 = arith.constant 0 : index
    %c0_17 = arith.constant 0 : index
    %27 = vector.load %arg11[%c0_16, %c0_17] : memref<8x1xf32, #tpu.memory_space<vmem>>, vector<8x1xf32>
    tpu.vector_store %arg11[%c0_16, %c0_17], %26 {strides = array<i32>} : memref<8x1xf32, #tpu.memory_space<vmem>>, vector<8x1xf32>,
    %c0_18 = arith.constant 0 : index
    %c0_19 = arith.constant 0 : index
    %28 = vector.load %arg10[%c0_18, %c0_19] : memref<8x1xf32, #tpu.memory_space<vmem>>, vector<8x1xf32>
    tpu.vector_store %arg10[%c0_18, %c0_19], %14 {strides = array<i32>} : memref<8x1xf32, #tpu.memory_space<vmem>>, vector<8x1xf32>,
    %cst_20 = arith.constant dense<0.000000e+00> : vector<8x32xf32>
    %29 = tpu.matmul %20, %8, %cst_20 {dimension_numbers = #tpu.dot_dimension_numbers<[1], [0], [0], [1], [0, 0, 1, 1], [], []>} : vector<8x8xbf16>, vector<8x32xbf16>, vector<8x32xf32> -> vector<8x32xf32>
    %c0_21 = arith.constant 0 : index
    %c0_22 = arith.constant 0 : index
    %30 = vector.load %arg9[%c0_21, %c0_22] : memref<8x32xf32, #tpu.memory_space<vmem>>, vector<8x32xf32>
    %31 = vector.broadcast %16 : vector<8x1xf32> to vector<8x32xf32>
    %32 = arith.mulf %31, %30 : vector<8x32xf32>
    %33 = arith.addf %32, %29 : vector<8x32xf32>
    %c0_23 = arith.constant 0 : index
    %c0_24 = arith.constant 0 : index
    %34 = vector.load %arg9[%c0_23, %c0_24] : memref<8x32xf32, #tpu.memory_space<vmem>>, vector<8x32xf32>
    tpu.vector_store %arg9[%c0_23, %c0_24], %33 {strides = array<i32>} : memref<8x32xf32, #tpu.memory_space<vmem>>, vector<8x32xf32>,
    %c0_i32_25 = arith.constant 0 : i32
    %35 = arith.cmpi eq, %arg3, %c0_i32_25 : i32
    %36 = arith.extui %35 : i1 to i32
    %c0_i32_26 = arith.constant 0 : i32
    %37 = arith.cmpi ne, %36, %c0_i32_26 : i32
    scf.if %37 {
      %c0_27 = arith.constant 0 : index
      %c0_28 = arith.constant 0 : index
      %38 = vector.load %arg11[%c0_27, %c0_28] : memref<8x1xf32, #tpu.memory_space<vmem>>, vector<8x1xf32>
      %39 = tpu.reciprocal %38 : vector<8x1xf32> -> vector<8x1xf32>
      %c0_29 = arith.constant 0 : index
      %c0_30 = arith.constant 0 : index
      %40 = vector.load %arg9[%c0_29, %c0_30] : memref<8x32xf32, #tpu.memory_space<vmem>>, vector<8x32xf32>
      %41 = vector.broadcast %39 : vector<8x1xf32> to vector<8x32xf32>
      %42 = arith.mulf %40, %41 : vector<8x32xf32>
      %c0_31 = arith.constant 0 : index
      %c0_32 = arith.constant 0 : index
      %c0_33 = arith.constant 0 : index
      %c0_34 = arith.constant 0 : index
      %43 = vector.load %arg7[%c0_31, %c0_32, %c0_33, %c0_34] : memref<1x1x8x32xf32, #tpu.memory_space<vmem>>, vector<1x1x8x32xf32>
      %44 = vector.shape_cast %43 : vector<1x1x8x32xf32> to vector<8x32xf32>
      %45 = vector.shape_cast %42 : vector<8x32xf32> to vector<1x1x8x32xf32>
      tpu.vector_store %arg7[%c0_31, %c0_32, %c0_33, %c0_34], %45 {strides = array<i32>} : memref<1x1x8x32xf32, #tpu.memory_space<vmem>>, vector<1x1x8x32xf32>,
    } else {
    }
    return
  }
  func.func @transform_0(%arg0: i32, %arg1: i32, %arg2: i32, %arg3: i32) -> (i32, i32, i32, i32) {
    %c0_i32 = arith.constant 0 : i32
    %c0_i32_0 = arith.constant 0 : i32
    return %arg0, %arg1, %arg2, %c0_i32 : i32, i32, i32, i32
  }
  func.func @transform_1(%arg0: i32, %arg1: i32, %arg2: i32, %arg3: i32) -> (i32, i32, i32, i32) {
    %c0_i32 = arith.constant 0 : i32
    %c0_i32_0 = arith.constant 0 : i32
    return %arg0, %arg1, %arg3, %c0_i32 : i32, i32, i32, i32
  }
  func.func @transform_2(%arg0: i32, %arg1: i32, %arg2: i32, %arg3: i32) -> (i32, i32, i32, i32) {
    %c0_i32 = arith.constant 0 : i32
    %c0_i32_0 = arith.constant 0 : i32
    return %arg0, %arg1, %arg3, %c0_i32 : i32, i32, i32, i32
  }
  func.func @transform_3(%arg0: i32, %arg1: i32, %arg2: i32, %arg3: i32) -> (i32, i32, i32, i32) {
    %c0_i32 = arith.constant 0 : i32
    %c0_i32_0 = arith.constant 0 : i32
    return %arg0, %arg1, %arg2, %c0_i32 : i32, i32, i32, i32
  }
}

</mosaic_0001>

<llo_original>
// kernel: scaled_dot_product_attention.1
$region0: #{scaled_dot_product_attention.1}
  #allocation0 [shape = 'u32[]', space=smem, size = 0x4, offset = 0x4, fixed_abs, tag = 'smem constant byte address 0x4 - core index']
  #allocation1 [shape = 'u32[144,128]{1,0:T(1,128)}', space=vmem, size = 0x12000, scoped, tag = 'internal scratch']
  #allocation2 [shape = 'bf16[8,32]{1,0:T(8,128)(2,1)}', space=vmem, size = 0x800, scoped, tag = 'scratch operand']
  #allocation3 [shape = 'f32[8,32]{1,0:T(8,128)}', space=vmem, size = 0x1000, scoped, tag = 'scratch operand']
  #allocation4 [shape = 'f32[8,1]{1,0:T(8,128)}', space=vmem, size = 0x1000, scoped, tag = 'scratch operand']
  #allocation5 [shape = 'f32[8,1]{1,0:T(8,128)}', space=vmem, size = 0x1000, scoped, tag = 'scratch operand']
  %s0 = inlined_call_operand.vmem [shape: f32[2,4,8,32], index: 0, kind: input, shape index: {}]
  %s1 = inlined_call_operand.vmem [shape: f32[2,4,8,32], index: 1, kind: input, shape index: {}]
  %s2 = inlined_call_operand.vmem [shape: f32[2,4,8,32], index: 2, kind: input, shape index: {}]
  %s3 = inlined_call_operand.vmem [shape: f32[2,4,8,32], index: 3, kind: output, shape index: {}]
  %s4 = sld [smem:[#allocation0]]
  $region53: #{scaled_dot_product_attention.1} parent=0
    _
  %s6 = ssub.s32 1, %s4
  %s7 = scalar_select 0, %s6, %s4
  loop: start=0, step=1, limit=10
  $region2: #{scaled_dot_product_attention.1} parent=0 // loop_pre_header
    _
  $region3: #{scaled_dot_product_attention.1} parent=0 // loop_header
    %s9 = sphi 0, %s13
    %p10 = scmp.ge.s32.totalorder %s9, 10
    %s16 = sphi 0, %s42
    %s17 = sphi 0, %s38
    %s18 = sphi 0, %s34
    %s19 = sphi 0, %s30
    %s20 = sphi 0, %s16
    %s21 = sphi 0, %s17
    %s22 = sphi 0, %s18
    %s23 = sphi 0, %s19
    %s24 = sphi 0, %s20
    %s25 = sphi 0, %s21
    %s26 = sphi 0, %s22
    %s27 = sphi 0, %s23
    %s49 = sphi 0, %s51
    %s52 = sphi 0, %s49
    %s53 = sphi 0, %s52
    %s69 = sphi 0, %s53
    %s79 = sphi 0, %s81
    %s82 = sphi 0, %s79
    %s83 = sphi 0, %s82
    %s99 = sphi 0, %s83
    %s109 = sphi 0, %s111
    %s112 = sphi 0, %s109
    %s113 = sphi 0, %s112
    %s129 = sphi 0, %s113
    %s139 = sphi 0, %s141
    %s142 = sphi 0, %s139
    %s143 = sphi 0, %s142
    %s159 = sphi 0, %s143
  $region4: #{scaled_dot_product_attention.1} parent=0 // loop_header_branch
    %12 = sbr.rel (%p10) target = $region8
  $region5: #{scaled_dot_product_attention.1} parent=0 // loop_body
    %s14 = ssub.s32 %s9, 1
    %s15 = ssub.s32 %s9, 2
    %s28 = sadd.s32 1, %s19
    %p29 = scmp.ge.s32.totalorder %s28, 1
    %s30 = scalar_select %p29, 0, %s28
    %s31 = sadd.s32 1, %s18
    %s32 = scalar_select %p29, %s31, %s18
    %p33 = scmp.ge.s32.totalorder %s32, 1
    %s34 = scalar_select %p33, 0, %s32
    %s35 = sadd.s32 1, %s17
    %s36 = scalar_select %p33, %s35, %s17
    %p37 = scmp.ge.s32.totalorder %s36, 4
    %s38 = scalar_select %p37, 0, %s36
    %s39 = sadd.s32 1, %s16
    %s40 = scalar_select %p37, %s39, %s16
    %p41 = scmp.ge.s32.totalorder %s40, 2
    %s42 = scalar_select %p41, 0, %s40
    %s43 = ssub.s32 %s16, %s42
    %s44 = ssub.s32 %s17, %s38
    %s45 = sor.u32 %s43, %s44
    %s46 = ssub.s32 %s18, %s34
    %s47 = sor.u32 %s45, %s46
    %p48 = scmp.eq.s32.totalorder %s47, 0
    %s50 = sadd.s32 %s49, 1
    %s51 = scalar_select %p48, %s49, %s50
    %p54 = pneg %p48
    %p55 = scmp.eq.s32.totalorder %s9, 7
    %p56 = por %p54, %p55
    %p57 = scmp.ne.s32.totalorder %s49, %s52
    %p58 = scmp.eq.s32.totalorder %s9, 0
    %p59 = por %p57, %p58
    %p60 = scmp.ne.s32.totalorder %s49, %s52
    %p61 = scmp.eq.s32.totalorder %s14, 7
    %p62 = por %p60, %p61
    %p63 = scmp.ne.s32.totalorder %s52, %s53
    %p64 = scmp.eq.s32.totalorder %s14, 0
    %p65 = por %p63, %p64
    %p66 = scmp.ne.s32.totalorder %s52, %s53
    %p67 = scmp.eq.s32.totalorder %s15, 7
    %p68 = por %p66, %p67
    %p70 = scmp.ne.s32.totalorder %s53, %s69
    %p71 = scmp.eq.s32.totalorder %s15, 0
    %p72 = por %p70, %p71
    %s73 = ssub.s32 %s16, %s42
    %s74 = ssub.s32 %s17, %s38
    %s75 = sor.u32 %s73, %s74
    %s76 = ssub.s32 %s19, %s30
    %s77 = sor.u32 %s75, %s76
    %p78 = scmp.eq.s32.totalorder %s77, 0
    %s80 = sadd.s32 %s79, 1
    %s81 = scalar_select %p78, %s79, %s80
    %p84 = pneg %p78
    %p85 = scmp.eq.s32.totalorder %s9, 7
    %p86 = por %p84, %p85
    %p87 = scmp.ne.s32.totalorder %s79, %s82
    %p88 = scmp.eq.s32.totalorder %s9, 0
    %p89 = por %p87, %p88
    %p90 = scmp.ne.s32.totalorder %s79, %s82
    %p91 = scmp.eq.s32.totalorder %s14, 7
    %p92 = por %p90, %p91
    %p93 = scmp.ne.s32.totalorder %s82, %s83
    %p94 = scmp.eq.s32.totalorder %s14, 0
    %p95 = por %p93, %p94
    %p96 = scmp.ne.s32.totalorder %s82, %s83
    %p97 = scmp.eq.s32.totalorder %s15, 7
    %p98 = por %p96, %p97
    %p100 = scmp.ne.s32.totalorder %s83, %s99
    %p101 = scmp.eq.s32.totalorder %s15, 0
    %p102 = por %p100, %p101
    %s103 = ssub.s32 %s16, %s42
    %s104 = ssub.s32 %s17, %s38
    %s105 = sor.u32 %s103, %s104
    %s106 = ssub.s32 %s19, %s30
    %s107 = sor.u32 %s105, %s106
    %p108 = scmp.eq.s32.totalorder %s107, 0
    %s110 = sadd.s32 %s109, 1
    %s111 = scalar_select %p108, %s109, %s110
    %p114 = pneg %p108
    %p115 = scmp.eq.s32.totalorder %s9, 7
    %p116 = por %p114, %p115
    %p117 = scmp.ne.s32.totalorder %s109, %s112
    %p118 = scmp.eq.s32.totalorder %s9, 0
    %p119 = por %p117, %p118
    %p120 = scmp.ne.s32.totalorder %s109, %s112
    %p121 = scmp.eq.s32.totalorder %s14, 7
    %p122 = por %p120, %p121
    %p123 = scmp.ne.s32.totalorder %s112, %s113
    %p124 = scmp.eq.s32.totalorder %s14, 0
    %p125 = por %p123, %p124
    %p126 = scmp.ne.s32.totalorder %s112, %s113
    %p127 = scmp.eq.s32.totalorder %s15, 7
    %p128 = por %p126, %p127
    %p130 = scmp.ne.s32.totalorder %s113, %s129
    %p131 = scmp.eq.s32.totalorder %s15, 0
    %p132 = por %p130, %p131
    %s133 = ssub.s32 %s16, %s42
    %s134 = ssub.s32 %s17, %s38
    %s135 = sor.u32 %s133, %s134
    %s136 = ssub.s32 %s18, %s34
    %s137 = sor.u32 %s135, %s136
    %p138 = scmp.eq.s32.totalorder %s137, 0
    %s140 = sadd.s32 %s139, 1
    %s141 = scalar_select %p138, %s139, %s140
    %p144 = pneg %p138
    %p145 = scmp.eq.s32.totalorder %s9, 7
    %p146 = por %p144, %p145
    %p147 = scmp.ne.s32.totalorder %s139, %s142
    %p148 = scmp.eq.s32.totalorder %s9, 0
    %p149 = por %p147, %p148
    %p150 = scmp.ne.s32.totalorder %s139, %s142
    %p151 = scmp.eq.s32.totalorder %s14, 7
    %p152 = por %p150, %p151
    %p153 = scmp.ne.s32.totalorder %s142, %s143
    %p154 = scmp.eq.s32.totalorder %s14, 0
    %p155 = por %p153, %p154
    %p156 = scmp.ne.s32.totalorder %s142, %s143
    %p157 = scmp.eq.s32.totalorder %s15, 7
    %p158 = por %p156, %p157
    %p160 = scmp.ne.s32.totalorder %s143, %s159
    %p161 = scmp.eq.s32.totalorder %s15, 0
    %p162 = por %p160, %p161
    %p163 = scmp.le.s32.totalorder 1, %s9
    %p164 = scmp.lt.s32.totalorder %s9, 9
    %p165 = pnand %p163, %p164
    %p166 = pneg %p165
    // Predicated region
    $region9: #{scaled_dot_product_attention.1} parent=5 // pred_check
      _
    $region10: #{scaled_dot_product_attention.1} parent=5 // pred_check_branch
      %168 = sbr.rel (%p165) target = $region12
    $region11: #{scaled_dot_product_attention.1} parent=5 // pred_region
      %s169 = ssub.s32 %s9, 1
    $region12: #{scaled_dot_product_attention.1} parent=5 // pred_fallthru
      _
    %p170 = scmp.lt.s32.totalorder %s9, 8
    // Predicated region
    $region13: #{scaled_dot_product_attention.1} parent=5 // pred_check
      %p171 = pneg %p170
    $region14: #{scaled_dot_product_attention.1} parent=5 // pred_check_branch
      %173 = sbr.rel (%p171) target = $region16
    $region15: #{scaled_dot_product_attention.1} parent=5 // pred_region
      // Predicated region
      $region17: #{scaled_dot_product_attention.1} parent=15 // pred_check
        %p174 = pneg %p59
      $region18: #{scaled_dot_product_attention.1} parent=15 // pred_check_branch
        %176 = sbr.rel (%p174) target = $region20
      $region19: #{scaled_dot_product_attention.1} parent=15 // pred_region
        %p177 = scmp.lt.s32.totalorder %s16, 1
        %s178 = scalar_select %p177, %s16, 1
        %p179 = scmp.lt.s32.totalorder %s17, 3
        %s180 = scalar_select %p179, %s17, 3
        %p181 = scmp.lt.s32.totalorder %s18, 0
        %s182 = scalar_select %p181, %s18, 0
        %s183 = sadd.s32 %s182, %s180
        %s184 = smul.addr %s178, 4
        %s185 = sadd.s32 %s183, %s184
        %s186 = smul.addr %s185, 8
        %s187 = scalar_lea.vmem %s0, %s186
      $region20: #{scaled_dot_product_attention.1} parent=15 // pred_fallthru
        _
      // Predicated region
      $region21: #{scaled_dot_product_attention.1} parent=15 // pred_check
        %p188 = pneg %p89
      $region22: #{scaled_dot_product_attention.1} parent=15 // pred_check_branch
        %190 = sbr.rel (%p188) target = $region24
      $region23: #{scaled_dot_product_attention.1} parent=15 // pred_region
        %p191 = scmp.lt.s32.totalorder %s16, 1
        %s192 = scalar_select %p191, %s16, 1
        %p193 = scmp.lt.s32.totalorder %s17, 3
        %s194 = scalar_select %p193, %s17, 3
        %p195 = scmp.lt.s32.totalorder %s19, 0
        %s196 = scalar_select %p195, %s19, 0
        %s197 = sadd.s32 %s196, %s194
        %s198 = smul.addr %s192, 4
        %s199 = sadd.s32 %s197, %s198
        %s200 = smul.addr %s199, 8
        %s201 = scalar_lea.vmem %s1, %s200
      $region24: #{scaled_dot_product_attention.1} parent=15 // pred_fallthru
        _
      // Predicated region
      $region25: #{scaled_dot_product_attention.1} parent=15 // pred_check
        %p202 = pneg %p119
      $region26: #{scaled_dot_product_attention.1} parent=15 // pred_check_branch
        %204 = sbr.rel (%p202) target = $region28
      $region27: #{scaled_dot_product_attention.1} parent=15 // pred_region
        %p205 = scmp.lt.s32.totalorder %s16, 1
        %s206 = scalar_select %p205, %s16, 1
        %p207 = scmp.lt.s32.totalorder %s17, 3
        %s208 = scalar_select %p207, %s17, 3
        %p209 = scmp.lt.s32.totalorder %s19, 0
        %s210 = scalar_select %p209, %s19, 0
        %s211 = sadd.s32 %s210, %s208
        %s212 = smul.addr %s206, 4
        %s213 = sadd.s32 %s211, %s212
        %s214 = smul.addr %s213, 8
        %s215 = scalar_lea.vmem %s2, %s214
      $region28: #{scaled_dot_product_attention.1} parent=15 // pred_fallthru
        _
    $region16: #{scaled_dot_product_attention.1} parent=5 // pred_fallthru
      _
    %p216 = scmp.le.s32.totalorder 1, %s9
    %p217 = scmp.lt.s32.totalorder %s9, 9
    %p218 = pnand %p216, %p217
    %p219 = pneg %p218
    // Predicated region
    $region29: #{scaled_dot_product_attention.1} parent=5 // pred_check
      _
    $region30: #{scaled_dot_product_attention.1} parent=5 // pred_check_branch
      %221 = sbr.rel (%p218) target = $region32
    $region31: #{scaled_dot_product_attention.1} parent=5 // pred_region
      %s222 = ssub.s32 %s9, 1
      %p223 = scmp.lt.s32.totalorder %s20, 1
      %s224 = scalar_select %p223, %s20, 1
      %p225 = scmp.lt.s32.totalorder %s21, 3
      %s226 = scalar_select %p225, %s21, 3
      %p227 = scmp.lt.s32.totalorder %s22, 0
      %s228 = scalar_select %p227, %s22, 0
      %s229 = sadd.s32 %s228, %s226
      %s230 = smul.addr %s224, 4
      %s231 = sadd.s32 %s229, %s230
      %s232 = smul.addr %s231, 8
      %s233 = scalar_lea.vmem %s0, %s232
      %p234 = pneg %p65
      %p235 = pneg %p62
      %p236 = scmp.lt.s32.totalorder %s20, 1
      %s237 = scalar_select %p236, %s20, 1
      %p238 = scmp.lt.s32.totalorder %s21, 3
      %s239 = scalar_select %p238, %s21, 3
      %p240 = scmp.lt.s32.totalorder %s23, 0
      %s241 = scalar_select %p240, %s23, 0
      %s242 = sadd.s32 %s241, %s239
      %s243 = smul.addr %s237, 4
      %s244 = sadd.s32 %s242, %s243
      %s245 = smul.addr %s244, 8
      %s246 = scalar_lea.vmem %s1, %s245
      %p247 = pneg %p95
      %p248 = pneg %p92
      %p249 = scmp.lt.s32.totalorder %s20, 1
      %s250 = scalar_select %p249, %s20, 1
      %p251 = scmp.lt.s32.totalorder %s21, 3
      %s252 = scalar_select %p251, %s21, 3
      %p253 = scmp.lt.s32.totalorder %s23, 0
      %s254 = scalar_select %p253, %s23, 0
      %s255 = sadd.s32 %s254, %s252
      %s256 = smul.addr %s250, 4
      %s257 = sadd.s32 %s255, %s256
      %s258 = smul.addr %s257, 8
      %s259 = scalar_lea.vmem %s2, %s258
      %p260 = pneg %p125
      %p261 = pneg %p122
      %p262 = pneg %p155
      %p263 = pneg %p152
      %p264 = scmp.lt.s32.totalorder %s20, 1
      %s265 = scalar_select %p264, %s20, 1
      %p266 = scmp.lt.s32.totalorder %s21, 3
      %s267 = scalar_select %p266, %s21, 3
      %p268 = scmp.lt.s32.totalorder %s22, 0
      %s269 = scalar_select %p268, %s22, 0
      %s270 = sadd.s32 %s269, %s267
      %s271 = smul.addr %s265, 4
      %s272 = sadd.s32 %s270, %s271
      %s273 = smul.addr %s272, 8
      %s274 = scalar_lea.vmem %s3, %s273
      %p275 = scmp.lt.s32.totalorder %s20, 1
      %s276 = scalar_select %p275, %s20, 1
      %p277 = scmp.lt.s32.totalorder %s21, 3
      %s278 = scalar_select %p277, %s21, 3
      %p279 = scmp.lt.s32.totalorder %s22, 0
      %s280 = scalar_select %p279, %s22, 0
      %s281 = sadd.s32 %s280, %s278
      %s282 = smul.addr %s276, 4
      %s283 = sadd.s32 %s281, %s282
      %s284 = smul.addr %s283, 8
      %s285 = scalar_lea.vmem %s0, %s284
      %p286 = scmp.lt.s32.totalorder %s20, 1
      %s287 = scalar_select %p286, %s20, 1
      %p288 = scmp.lt.s32.totalorder %s21, 3
      %s289 = scalar_select %p288, %s21, 3
      %p290 = scmp.lt.s32.totalorder %s23, 0
      %s291 = scalar_select %p290, %s23, 0
      %s292 = sadd.s32 %s291, %s289
      %s293 = smul.addr %s287, 4
      %s294 = sadd.s32 %s292, %s293
      %s295 = smul.addr %s294, 8
      %s296 = scalar_lea.vmem %s1, %s295
      %p297 = scmp.lt.s32.totalorder %s20, 1
      %s298 = scalar_select %p297, %s20, 1
      %p299 = scmp.lt.s32.totalorder %s21, 3
      %s300 = scalar_select %p299, %s21, 3
      %p301 = scmp.lt.s32.totalorder %s23, 0
      %s302 = scalar_select %p301, %s23, 0
      %s303 = sadd.s32 %s302, %s300
      %s304 = smul.addr %s298, 4
      %s305 = sadd.s32 %s303, %s304
      %s306 = smul.addr %s305, 8
      %s307 = scalar_lea.vmem %s2, %s306
      %p308 = scmp.lt.s32.totalorder %s20, 1
      %s309 = scalar_select %p308, %s20, 1
      %p310 = scmp.lt.s32.totalorder %s21, 3
      %s311 = scalar_select %p310, %s21, 3
      %p312 = scmp.lt.s32.totalorder %s22, 0
      %s313 = scalar_select %p312, %s22, 0
      %s314 = sadd.s32 %s313, %s311
      %s315 = smul.addr %s309, 4
      %s316 = sadd.s32 %s314, %s315
      %s317 = smul.addr %s316, 8
      %s318 = scalar_lea.vmem %s3, %s317
      %p320 = scmp.eq.s32.totalorder %s23, 0
      // Predicated region
      $region33: #{scaled_dot_product_attention.1} parent=31 // pred_check
        %p321 = pneg %p320
      $region34: #{scaled_dot_product_attention.1} parent=31 // pred_check_branch
        %323 = sbr.rel (%p321) target = $region36
      $region35: #{scaled_dot_product_attention.1} parent=31 // pred_region
        %v324 = vld [vmem:[%s285] sm:$0xff]
        %v325 = vmul.f32 %v324, 0.17677669
        %v326 = vpack.c.bf16 %v325, %v325
        %vm327 = vcmask 257024
        %328 = vst.msk [vmem:[#allocation2] sm:$0xf] %vm327, %v326
        %vm329 = vcmask 7168
        %330 = vst.msk [vmem:[#allocation4] sm:$0xff] %vm329, -inf
        %331 = vst.msk [vmem:[#allocation5] sm:$0xff] %vm329, 0.0
        %vm332 = vcmask 261120
        %333 = vst.msk [vmem:[#allocation3] sm:$0xff] %vm332, 0.0
      $region36: #{scaled_dot_product_attention.1} parent=31 // pred_fallthru
        _
      %v334 = vld [vmem:[%s296] sm:$0xff]
      %v335 = vpack.c.bf16 %v334, %v334
      %v336 = vld [vmem:[%s307] sm:$0xff]
      %v337 = vpack.c.bf16 %v336, %v336
      %v338 = vld [vmem:[#allocation2] sm:$0xf]
      %vm339 = vcmask 261120
      %v341 = vsel %vm339, %v338, 0
      %v344 = vsel %vm339, %v335, 0
      %346 = vmatprep.subr.bf16.mxu0 0
      %347 = vmatpush1.bf16.xpose.msra.mxu0 0
      %348 = vmatprep.subr.bf16.mxu0 0
      %349 = vmatpush1.bf16.xpose.msra.mxu0 0
      %350 = vmatprep.subr.bf16.mxu0 0
      %351 = vmatpush1.bf16.xpose.msra.mxu0 0
      %352 = vmatprep.subr.bf16.mxu0 0
      %353 = vmatpush1.bf16.xpose.msra.mxu0 0
      %354 = vmatprep.subr.bf16.mxu0 0
      %355 = vmatpush1.bf16.xpose.msra.mxu0 0
      %356 = vmatprep.subr.bf16.mxu0 0
      %357 = vmatpush1.bf16.xpose.msra.mxu0 0
      %358 = vmatprep.subr.bf16.mxu0 0
      %359 = vmatpush1.bf16.xpose.msra.mxu0 0
      %360 = vmatprep.subr.bf16.mxu0 0
      %361 = vmatpush1.bf16.xpose.msra.mxu0 %v344
      %362 = vmatprep.subr.bf16.mxu0 0
      %363 = vmatpush2.bf16.xpose.msra.mxu0 0
      %364 = vmatprep.subr.bf16.mxu0 0
      %365 = vmatpush2.bf16.xpose.msra.mxu0 0
      %366 = vmatprep.subr.bf16.mxu0 0
      %367 = vmatpush2.bf16.xpose.msra.mxu0 0
      %368 = vmatprep.subr.bf16.mxu0 0
      %369 = vmatpush2.bf16.xpose.msra.mxu0 0
      %370 = vmatprep.subr.bf16.mxu0 0
      %371 = vmatpush2.bf16.xpose.msra.mxu0 0
      %372 = vmatprep.subr.bf16.mxu0 0
      %373 = vmatpush2.bf16.xpose.msra.mxu0 0
      %374 = vmatprep.subr.bf16.mxu0 0
      %375 = vmatpush2.bf16.xpose.msra.mxu0 0
      %376 = vmatprep.subr.bf16.mxu0 0
      %377 = vmatpush2.bf16.xpose.msra.mxu0 0
      %378 = vmatprep.mubr.bf16.mxu0 0
      %379 = vmatmul.mubr.bf16.gmra.mxu0 %v341
      %v380 = vpop.f32.mrf.mxu0
      %v381 = vadd.f32 0.0, %v380
      %v382 = vpop.f32.mrf.mxu0
      %v383 = vpop.f32.mrf.mxu0
      %v384 = vpop.f32.mrf.mxu0
      %385 = vdwg.mxu0
      %v386 = vld [vmem:[#allocation4] sm:$0xff]
      %vm387 = vcmask 64512
      %v388 = vsel %vm387, %v381, -inf
      %389 = vmax.xlane.f32.xlu0 %v388
      %v390 = vpop.xlane.xlu0 %389
      %v391 = vmax.f32 %v386, %v390
      %v392 = vsub.f32 %v386, %v391
      %v393 = vmul.f32 %v392, 1.442695
      %v394 = vpow.pop %v393
      %396 = vset.pattern.permute.xlu0 0
      %397 = vperm.xlu0 %396, %v391
      %v398 = vpop.permute.xlu0 %397
      %v400 = vsub.f32 %v381, %v398
      %v401 = vpack.c.bf16 %v400, %v400
      %v403 = vmul.bf16 %v401, 1069105081
      %v404 = vpow.bf16.pop %v403
      %v405 = vld [vmem:[#allocation5] sm:$0xff]
      %v406 = vmul.f32 %v394, %v405
      %v407 = vunpack.c.l.bf16 %v404
      %v408 = vsel %vm387, %v407, 0.0
      %409 = vadd.xlane.f32.xlu0 %v408
      %v410 = vpop.xlane.xlu0 %409
      %v411 = vadd.f32 %v406, %v410
      %vm412 = vcmask 7168
      %413 = vst.msk [vmem:[#allocation5] sm:$0xff] %vm412, %v411
      %414 = vst.msk [vmem:[#allocation4] sm:$0xff] %vm412, %v391
      %v416 = vsel %vm387, %v404, 0
      %vm418 = vcmask 1043456
      %v420 = vsel %vm418, %v337, 0
      %422 = vmatprep.subr.bf16.mxu0 0
      %423 = vmatpush1.bf16.msra.mxu0 0
      %424 = vmatprep.subr.bf16.mxu0 0
      %425 = vmatpush1.bf16.msra.mxu0 0
      %426 = vmatprep.subr.bf16.mxu0 0
      %427 = vmatpush1.bf16.msra.mxu0 0
      %428 = vmatprep.subr.bf16.mxu0 0
      %429 = vmatpush1.bf16.msra.mxu0 0
      %430 = vmatprep.subr.bf16.mxu0 0
      %431 = vmatpush1.bf16.msra.mxu0 0
      %432 = vmatprep.subr.bf16.mxu0 0
      %433 = vmatpush1.bf16.msra.mxu0 0
      %434 = vmatprep.subr.bf16.mxu0 0
      %435 = vmatpush1.bf16.msra.mxu0 0
      %436 = vmatprep.subr.bf16.mxu0 0
      %437 = vmatpush1.bf16.msra.mxu0 %v420
      %438 = vmatprep.subr.bf16.mxu0 0
      %439 = vmatpush2.bf16.msra.mxu0 0
      %440 = vmatprep.subr.bf16.mxu0 0
      %441 = vmatpush2.bf16.msra.mxu0 0
      %442 = vmatprep.subr.bf16.mxu0 0
      %443 = vmatpush2.bf16.msra.mxu0 0
      %444 = vmatprep.subr.bf16.mxu0 0
      %445 = vmatpush2.bf16.msra.mxu0 0
      %446 = vmatprep.subr.bf16.mxu0 0
      %447 = vmatpush2.bf16.msra.mxu0 0
      %448 = vmatprep.subr.bf16.mxu0 0
      %449 = vmatpush2.bf16.msra.mxu0 0
      %450 = vmatprep.subr.bf16.mxu0 0
      %451 = vmatpush2.bf16.msra.mxu0 0
      %452 = vmatprep.subr.bf16.mxu0 0
      %453 = vmatpush2.bf16.msra.mxu0 0
      %454 = vmatprep.mubr.bf16.mxu0 0
      %455 = vmatmul.mubr.bf16.gmra.mxu0 %v416
      %v456 = vpop.f32.mrf.mxu0
      %v457 = vadd.f32 0.0, %v456
      %v458 = vpop.f32.mrf.mxu0
      %v459 = vpop.f32.mrf.mxu0
      %v460 = vpop.f32.mrf.mxu0
      %461 = vdwg.mxu0
      %v462 = vld [vmem:[#allocation3] sm:$0xff]
      %464 = vset.pattern.permute.xlu0 0
      %465 = vperm.xlu0 %464, %v394
      %v466 = vpop.permute.xlu0 %465
      %v468 = vmul.f32 %v466, %v462
      %v469 = vadd.f32 %v468, %v457
      %470 = vst.msk [vmem:[#allocation3] sm:$0xff] %vm339, %v469
      // Predicated region
      $region37: #{scaled_dot_product_attention.1} parent=31 // pred_check
        %p471 = pneg %p320
      $region38: #{scaled_dot_product_attention.1} parent=31 // pred_check_branch
        %473 = sbr.rel (%p471) target = $region40
      $region39: #{scaled_dot_product_attention.1} parent=31 // pred_region
        %v474 = vld [vmem:[#allocation5] sm:$0xff]
        %v475 = vrcp.pop %v474
        %v476 = vld [vmem:[#allocation3] sm:$0xff]
        %478 = vset.pattern.permute.xlu0 0
        %479 = vperm.xlu0 %478, %v475
        %v480 = vpop.permute.xlu0 %479
        %v482 = vmul.f32 %v476, %v480
        %483 = vst.msk [vmem:[%s318] sm:$0xff] %vm339, %v482
      $region40: #{scaled_dot_product_attention.1} parent=31 // pred_fallthru
        _
      %p484 = scmp.lt.s32.totalorder %s20, 1
      %s485 = scalar_select %p484, %s20, 1
      %p486 = scmp.lt.s32.totalorder %s21, 3
      %s487 = scalar_select %p486, %s21, 3
      %p488 = scmp.lt.s32.totalorder %s22, 0
      %s489 = scalar_select %p488, %s22, 0
      %s490 = sadd.s32 %s489, %s487
      %s491 = smul.addr %s485, 4
      %s492 = sadd.s32 %s490, %s491
      %s493 = smul.addr %s492, 8
      %s494 = scalar_lea.vmem %s3, %s493
      // Predicated region
      $region41: #{scaled_dot_product_attention.1} parent=31 // pred_check
        %p495 = pneg %p152
      $region42: #{scaled_dot_product_attention.1} parent=31 // pred_check_branch
        %497 = sbr.rel (%p495) target = $region44
      $region43: #{scaled_dot_product_attention.1} parent=31 // pred_region
        _
      $region44: #{scaled_dot_product_attention.1} parent=31 // pred_fallthru
        _
    $region32: #{scaled_dot_product_attention.1} parent=5 // pred_fallthru
      _
    %p498 = scmp.le.s32.totalorder 2, %s9
    // Predicated region
    $region45: #{scaled_dot_product_attention.1} parent=5 // pred_check
      %p499 = pneg %p498
    $region46: #{scaled_dot_product_attention.1} parent=5 // pred_check_branch
      %501 = sbr.rel (%p499) target = $region48
    $region47: #{scaled_dot_product_attention.1} parent=5 // pred_region
      %s502 = ssub.s32 %s9, 2
      // Predicated region
      $region49: #{scaled_dot_product_attention.1} parent=47 // pred_check
        %p503 = pneg %p158
      $region50: #{scaled_dot_product_attention.1} parent=47 // pred_check_branch
        %505 = sbr.rel (%p503) target = $region52
      $region51: #{scaled_dot_product_attention.1} parent=47 // pred_region
        %p506 = scmp.lt.s32.totalorder %s24, 1
        %s507 = scalar_select %p506, %s24, 1
        %p508 = scmp.lt.s32.totalorder %s25, 3
        %s509 = scalar_select %p508, %s25, 3
        %p510 = scmp.lt.s32.totalorder %s26, 0
        %s511 = scalar_select %p510, %s26, 0
        %s512 = sadd.s32 %s511, %s509
        %s513 = smul.addr %s507, 4
        %s514 = sadd.s32 %s512, %s513
        %s515 = smul.addr %s514, 8
        %s516 = scalar_lea.vmem %s3, %s515
      $region52: #{scaled_dot_product_attention.1} parent=47 // pred_fallthru
        _
    $region48: #{scaled_dot_product_attention.1} parent=5 // pred_fallthru
      _
  $region6: #{scaled_dot_product_attention.1} parent=0 // loop_footer
    %s13 = sadd.s32 1, %s9
  $region7: #{scaled_dot_product_attention.1} parent=0 // loop_footer_branch
    %8 = sbr.rel target = $region3
  $region8: #{scaled_dot_product_attention.1} parent=0 // loop_exit
    _

</llo_original>
